<compile_context>
chip_gen: v7x
topology: tpu7x:2x2x1
jax: 0.10.0
libtpu: 0.0.40
codegen_flags: <defaults>
</compile_context>

<pallas_src>
import jax
import jax.numpy as jnp
from jax.experimental import pallas as pl
from jax.experimental.pallas import tpu as pltpu

IN_FEAT = 28 * 28       # 784
HIDDEN = 300
OUT_FEAT = 10
HIDDEN_PAD = 384        # 3 * 128  (lane-aligned hidden)
OUT_PAD = 128           # 1 * 128  (lane-aligned output -> unmasked stores)


def _round_up(x, m):
    return ((x + m - 1) // m) * m


def mlp_kernel(x_ref, w1_ref, b1_ref, w2_ref, b2_ref, o_ref):
    # x_ref:  (TB, 784)        activations tile (pipelined over the batch grid axis)
    # w1_ref: (784, 384)       resident weights (padded, pre-transposed to (in, out))
    # b1_ref: (1, 384)
    # w2_ref: (384, 128)
    # b2_ref: (1, 128)
    # o_ref:  (TB, 128)        lane-dense output tile
    x = x_ref[...]
    h = jnp.dot(x, w1_ref[...], preferred_element_type=jnp.float32) + b1_ref[...]
    h = jnp.maximum(h, 0.0)                                  # ReLU
    y = jnp.dot(h, w2_ref[...], preferred_element_type=jnp.float32) + b2_ref[...]
    o_ref[...] = y.astype(o_ref.dtype)


def prepare_layer2_params(w1, b1, w2, b2, param_dtype=jnp.float32):
    """One-time parameter prep (call at load time, NOT per forward).

    w1: (300, 784), b1: (300,), w2: (10, 300), b2: (10,) -- PyTorch (out, in) layout.
    Returns weights transposed to (in, out) and zero-padded to lane-aligned shapes.
    """
    w1_t = jnp.zeros((IN_FEAT, HIDDEN_PAD), param_dtype)
    w1_t = w1_t.at[:, :HIDDEN].set(w1.T.astype(param_dtype))          # (784, 384)
    b1_p = jnp.zeros((1, HIDDEN_PAD), param_dtype)
    b1_p = b1_p.at[0, :HIDDEN].set(b1.astype(param_dtype))            # (1, 384)
    w2_t = jnp.zeros((HIDDEN_PAD, OUT_PAD), param_dtype)
    w2_t = w2_t.at[:HIDDEN, :OUT_FEAT].set(w2.T.astype(param_dtype))  # (384, 128)
    b2_p = jnp.zeros((1, OUT_PAD), param_dtype)
    b2_p = b2_p.at[0, :OUT_FEAT].set(b2.astype(param_dtype))          # (1, 128)
    return w1_t, b1_p, w2_t, b2_p


def layer2_forward(x_nchw, params, block_b=512):
    """x_nchw: (B, 1, 28, 28) float32; params from prepare_layer2_params."""
    w1_t, b1_p, w2_t, b2_p = params
    B = x_nchw.shape[0]
    x_flat = x_nchw.reshape(B, -1).astype(jnp.float32)       # nn.Flatten -> (B, 784)

    # Batch tile: multiple of 8 (sublane), capped so VMEM stays comfortable on all gens.
    tb = min(block_b, _round_up(B, 8))
    b_pad = _round_up(B, tb)
    if b_pad != B:
        x_flat = jnp.pad(x_flat, ((0, b_pad - B), (0, 0)))

    out = pl.pallas_call(
        mlp_kernel,
        out_shape=jax.ShapeDtypeStruct((b_pad, OUT_PAD), jnp.float32),
        grid=(b_pad // tb,),
        in_specs=[
            pl.BlockSpec((tb, IN_FEAT), lambda i: (i, 0)),          # pipelined activations
            pl.BlockSpec((IN_FEAT, HIDDEN_PAD), lambda i: (0, 0)),  # resident weights
            pl.BlockSpec((1, HIDDEN_PAD), lambda i: (0, 0)),
            pl.BlockSpec((HIDDEN_PAD, OUT_PAD), lambda i: (0, 0)),
            pl.BlockSpec((1, OUT_PAD), lambda i: (0, 0)),
        ],
        out_specs=pl.BlockSpec((tb, OUT_PAD), lambda i: (i, 0)),
        compiler_params=pltpu.CompilerParams(
            dimension_semantics=("parallel",),   # v7x: shard batch steps across 2 TCs
        ),
    )(x_flat, w1_t, b1_p, w2_t, b2_p)

    return out[:B, :OUT_FEAT]


if __name__ == "__main__":
    key = jax.random.PRNGKey(0)
    k_x, k_w1, k_b1, k_w2, k_b2 = jax.random.split(key, 5)

    B = 8
    # Input consistent with MNIST-style NCHW images feeding 28*28 Flatten.
    x = jax.random.normal(k_x, (B, 1, 28, 28), dtype=jnp.float32)

    # Deterministic parameters (PyTorch nn.Linear shapes: (out, in) and (out,)).
    w1 = jax.random.normal(k_w1, (HIDDEN, IN_FEAT), dtype=jnp.float32) * 0.02
    b1 = jax.random.normal(k_b1, (HIDDEN,), dtype=jnp.float32) * 0.02
    w2 = jax.random.normal(k_w2, (OUT_FEAT, HIDDEN), dtype=jnp.float32) * 0.02
    b2 = jax.random.normal(k_b2, (OUT_FEAT,), dtype=jnp.float32) * 0.02

    # One-time parameter prep (hoisted out of the per-call path).
    params = jax.tree.map(jax.block_until_ready, prepare_layer2_params(w1, b1, w2, b2))

    out = layer2_forward(x, params)
    out = jax.block_until_ready(out)

    # Reference check in plain JAX (same math as the PyTorch module).
    x_flat = x.reshape(B, -1)
    ref = jnp.maximum(x_flat @ w1.T + b1, 0.0) @ w2.T + b2
    assert out.shape == (B, OUT_FEAT)
    assert jnp.allclose(out, ref, atol=1e-4, rtol=1e-4)

    print("KERNEL_OK")
</pallas_src>

<mosaic_0001>
module attributes {stable_mosaic.version = 11 : i64} {
  func.func @mlp_kernel(%arg0: i32, %arg1: memref<8x784xf32, #tpu.memory_space<vmem>>, %arg2: memref<784x384xf32, #tpu.memory_space<vmem>>, %arg3: memref<1x384xf32, #tpu.memory_space<vmem>>, %arg4: memref<384x128xf32, #tpu.memory_space<vmem>>, %arg5: memref<1x128xf32, #tpu.memory_space<vmem>>, %arg6: memref<8x128xf32, #tpu.memory_space<vmem>>) attributes {dimension_semantics = [#tpu.dimension_semantics<parallel>], iteration_bounds = array<i64: 1>, scalar_prefetch = 0 : i64, scratch_operands = 0 : i64, tpu.core_type = #tpu.core_type<tc>, window_params = [{transform_indices = @transform_0, window_bounds = array<i64: 8, 784>}, {pipeline_mode = #tpu.pipeline_mode<synchronous>, transform_indices = @transform_1, window_bounds = array<i64: 784, 384>}, {pipeline_mode = #tpu.pipeline_mode<synchronous>, transform_indices = @transform_2, window_bounds = array<i64: 1, 384>}, {pipeline_mode = #tpu.pipeline_mode<synchronous>, transform_indices = @transform_3, window_bounds = array<i64: 384, 128>}, {pipeline_mode = #tpu.pipeline_mode<synchronous>, transform_indices = @transform_4, window_bounds = array<i64: 1, 128>}, {transform_indices = @transform_5, window_bounds = array<i64: 8, 128>}]} {
    %c0 = arith.constant 0 : index
    %c0_0 = arith.constant 0 : index
    %0 = vector.load %arg1[%c0, %c0_0] : memref<8x784xf32, #tpu.memory_space<vmem>>, vector<8x784xf32>
    %c0_1 = arith.constant 0 : index
    %c0_2 = arith.constant 0 : index
    %1 = vector.load %arg2[%c0_1, %c0_2] : memref<784x384xf32, #tpu.memory_space<vmem>>, vector<784x384xf32>
    %cst = arith.constant dense<0.000000e+00> : vector<8x384xf32>
    %2 = tpu.matmul %0, %1, %cst {dimension_numbers = #tpu.dot_dimension_numbers<[1], [0], [0], [1], [0, 0, 1, 1], [], []>} : vector<8x784xf32>, vector<784x384xf32>, vector<8x384xf32> -> vector<8x384xf32>
    %c0_3 = arith.constant 0 : index
    %c0_4 = arith.constant 0 : index
    %3 = vector.load %arg3[%c0_3, %c0_4] : memref<1x384xf32, #tpu.memory_space<vmem>>, vector<1x384xf32>
    %4 = vector.broadcast %3 : vector<1x384xf32> to vector<8x384xf32>
    %5 = arith.addf %2, %4 : vector<8x384xf32>
    %cst_5 = arith.constant 0.000000e+00 : f32
    %6 = vector.broadcast %cst_5 : f32 to vector<8x384xf32>
    %7 = arith.maximumf %5, %6 : vector<8x384xf32>
    %c0_6 = arith.constant 0 : index
    %c0_7 = arith.constant 0 : index
    %8 = vector.load %arg4[%c0_6, %c0_7] : memref<384x128xf32, #tpu.memory_space<vmem>>, vector<384x128xf32>
    %cst_8 = arith.constant dense<0.000000e+00> : vector<8x128xf32>
    %9 = tpu.matmul %7, %8, %cst_8 {dimension_numbers = #tpu.dot_dimension_numbers<[1], [0], [0], [1], [0, 0, 1, 1], [], []>} : vector<8x384xf32>, vector<384x128xf32>, vector<8x128xf32> -> vector<8x128xf32>
    %c0_9 = arith.constant 0 : index
    %c0_10 = arith.constant 0 : index
    %10 = vector.load %arg5[%c0_9, %c0_10] : memref<1x128xf32, #tpu.memory_space<vmem>>, vector<1x128xf32>
    %11 = vector.broadcast %10 : vector<1x128xf32> to vector<8x128xf32>
    %12 = arith.addf %9, %11 : vector<8x128xf32>
    %c0_11 = arith.constant 0 : index
    %c0_12 = arith.constant 0 : index
    %13 = vector.load %arg6[%c0_11, %c0_12] : memref<8x128xf32, #tpu.memory_space<vmem>>, vector<8x128xf32>
    tpu.vector_store %arg6[%c0_11, %c0_12], %12 {strides = array<i32>} : memref<8x128xf32, #tpu.memory_space<vmem>>, vector<8x128xf32>,
    return
  }
  func.func @transform_0(%arg0: i32) -> (i32, i32) {
    %c0_i32 = arith.constant 0 : i32
    %c0_i32_0 = arith.constant 0 : i32
    return %arg0, %c0_i32 : i32, i32
  }
  func.func @transform_1(%arg0: i32) -> (i32, i32) {
    %c0_i32 = arith.constant 0 : i32
    %c0_i32_0 = arith.constant 0 : i32
    %c0_i32_1 = arith.constant 0 : i32
    return %c0_i32, %c0_i32_0 : i32, i32
  }
  func.func @transform_2(%arg0: i32) -> (i32, i32) {
    %c0_i32 = arith.constant 0 : i32
    %c0_i32_0 = arith.constant 0 : i32
    %c0_i32_1 = arith.constant 0 : i32
    return %c0_i32, %c0_i32_0 : i32, i32
  }
  func.func @transform_3(%arg0: i32) -> (i32, i32) {
    %c0_i32 = arith.constant 0 : i32
    %c0_i32_0 = arith.constant 0 : i32
    %c0_i32_1 = arith.constant 0 : i32
    return %c0_i32, %c0_i32_0 : i32, i32
  }
  func.func @transform_4(%arg0: i32) -> (i32, i32) {
    %c0_i32 = arith.constant 0 : i32
    %c0_i32_0 = arith.constant 0 : i32
    %c0_i32_1 = arith.constant 0 : i32
    return %c0_i32, %c0_i32_0 : i32, i32
  }
  func.func @transform_5(%arg0: i32) -> (i32, i32) {
    %c0_i32 = arith.constant 0 : i32
    %c0_i32_0 = arith.constant 0 : i32
    return %arg0, %c0_i32 : i32, i32
  }
}

</mosaic_0001>

<llo_original>
// kernel: tpu_custom_call.1
$region0: #{tpu_custom_call.1}
  #allocation0 [shape = 'u32[]', space=smem, size = 0x4, offset = 0x4, fixed_abs, tag = 'smem constant byte address 0x4 - core index']
  #allocation1 [shape = 'u32[144,128]{1,0:T(1,128)}', space=vmem, size = 0x12000, scoped, tag = 'internal scratch']
  %s0 = inlined_call_operand.hbm [shape: f32[8,784], index: 0, kind: input, shape index: {}]
  %s1 = inlined_call_operand.hbm [shape: f32[784,384], index: 1, kind: input, shape index: {}]
  %s2 = inlined_call_operand.hbm [shape: f32[1,384], index: 2, kind: input, shape index: {}]
  %s3 = inlined_call_operand.hbm [shape: f32[384,128], index: 3, kind: input, shape index: {}]
  %s4 = inlined_call_operand.hbm [shape: f32[1,128], index: 4, kind: input, shape index: {}]
  %s5 = inlined_call_operand.hbm [shape: f32[8,128], index: 5, kind: output, shape index: {}]
  %s6 = sld [smem:[#allocation0]]
  $region50: #{tpu_custom_call.1} parent=0
    _
  %s8 = ssub.s32 1, %s6
  %s9 = scalar_select 0, %s8, %s6
  $region1: #{tpu_custom_call.1} parent=0
    #allocation2 [shape = 'u8[28672]{0}', space=vmem, size = 0x7000, scoped, tag = 'input window, operand 0, single buffered']
    #allocation3 [shape = 's32[1]{0}', space=sflag, size = 0x4, scoped, tag = 'scoped memory for tpu_custom_call.1']
    #allocation4 [shape = 's32[1]{0}', space=sflag, size = 0x4, scoped, tag = 'scoped memory for tpu_custom_call.1']
    #allocation5 [shape = 'u8[1204224]{0}', space=vmem, size = 0x126000, scoped, tag = 'input window, operand 1, single buffered']
    #allocation6 [shape = 's32[1]{0}', space=sflag, size = 0x4, scoped, tag = 'scoped memory for tpu_custom_call.1']
    #allocation7 [shape = 'u8[1536]{0}', space=vmem, size = 0x800, scoped, tag = 'input window, operand 2, single buffered']
    #allocation8 [shape = 'u8[196608]{0}', space=vmem, size = 0x30000, scoped, tag = 'input window, operand 3, single buffered']
    #allocation9 [shape = 's32[1]{0}', space=sflag, size = 0x4, scoped, tag = 'scoped memory for tpu_custom_call.1']
    #allocation10 [shape = 'u8[512]{0}', space=vmem, size = 0x400, scoped, tag = 'input window, operand 4, single buffered']
    #allocation11 [shape = 'u8[4096]{0}', space=vmem, size = 0x1000, scoped, tag = 'output window, operand 0, single buffered']
    %10 = vsyncpa [#allocation3], 0
    %11 = vsyncpa [#allocation6], 0
    %12 = vsyncpa [#allocation9], 0
    %13 = vsyncpa [#allocation4], 0
    // Predicated region
    $region2: #{tpu_custom_call.1} parent=1 // pred_check
      _
    $region3: #{tpu_custom_call.1} parent=1 // pred_check_branch
      %15 = sbr.rel (0) target = $region5
    $region4: #{tpu_custom_call.1} parent=1 // pred_region
      %s17 = ssub.s32 896, 896
      %18 = vsyncadd [#allocation3], %s17
      %s20 = sshll.u32 [#allocation2], 4
      %s21 = int_to_ptr.vmem [resolvable:$true] %s20
      %23 = dma.hbm_to_vmem [thread:$0]  %s0, 896, %s21, [#allocation3]
    $region5: #{tpu_custom_call.1} parent=1 // pred_fallthru
      _
    // Predicated region
    $region6: #{tpu_custom_call.1} parent=1 // pred_check
      _
    $region7: #{tpu_custom_call.1} parent=1 // pred_check_branch
      %25 = sbr.rel (0) target = $region9
    $region8: #{tpu_custom_call.1} parent=1 // pred_region
      %s27 = ssub.s32 37632, 37632
      %28 = vsyncadd [#allocation6], %s27
      %s29 = sshll.u32 [#allocation5], 4
      %s30 = int_to_ptr.vmem [resolvable:$true] %s29
      %35 = dma.hbm_to_vmem [thread:$0]  %s1, 37632, %s30, [#allocation6], 384, 384, 24
    $region9: #{tpu_custom_call.1} parent=1 // pred_fallthru
      _
    // Predicated region
    $region10: #{tpu_custom_call.1} parent=1 // pred_check
      _
    $region11: #{tpu_custom_call.1} parent=1 // pred_check_branch
      %37 = sbr.rel (0) target = $region13
    $region12: #{tpu_custom_call.1} parent=1 // pred_region
      %s39 = ssub.s32 48, 48
      %40 = vsyncadd [#allocation6], %s39
      %s42 = sshll.u32 [#allocation7], 4
      %s43 = int_to_ptr.vmem [resolvable:$true] %s42
      %45 = dma.hbm_to_vmem [thread:$0]  %s2, 48, %s43, [#allocation6]
    $region13: #{tpu_custom_call.1} parent=1 // pred_fallthru
      _
    // Predicated region
    $region14: #{tpu_custom_call.1} parent=1 // pred_check
      _
    $region15: #{tpu_custom_call.1} parent=1 // pred_check_branch
      %47 = sbr.rel (0) target = $region17
    $region16: #{tpu_custom_call.1} parent=1 // pred_region
      %s49 = ssub.s32 6144, 6144
      %50 = vsyncadd [#allocation9], %s49
      %s51 = sshll.u32 [#allocation8], 4
      %s52 = int_to_ptr.vmem [resolvable:$true] %s51
      %57 = dma.hbm_to_vmem [thread:$0]  %s3, 6144, %s52, [#allocation9], 128, 128, 8
    $region17: #{tpu_custom_call.1} parent=1 // pred_fallthru
      _
    // Predicated region
    $region18: #{tpu_custom_call.1} parent=1 // pred_check
      _
    $region19: #{tpu_custom_call.1} parent=1 // pred_check_branch
      %59 = sbr.rel (0) target = $region21
    $region20: #{tpu_custom_call.1} parent=1 // pred_region
      %s61 = ssub.s32 16, 16
      %62 = vsyncadd [#allocation9], %s61
      %s64 = sshll.u32 [#allocation10], 4
      %s65 = int_to_ptr.vmem [resolvable:$true] %s64
      %67 = dma.hbm_to_vmem [thread:$0]  %s4, 16, %s65, [#allocation9]
    $region21: #{tpu_custom_call.1} parent=1 // pred_fallthru
      _
    // Predicated region
    $region22: #{tpu_custom_call.1} parent=1 // pred_check
      _
    $region23: #{tpu_custom_call.1} parent=1 // pred_check_branch
      %69 = sbr.rel (0) target = $region25
    $region24: #{tpu_custom_call.1} parent=1 // pred_region
      %70 = dma.done [#allocation3], 896
    $region25: #{tpu_custom_call.1} parent=1 // pred_fallthru
      _
    // Predicated region
    $region26: #{tpu_custom_call.1} parent=1 // pred_check
      _
    $region27: #{tpu_custom_call.1} parent=1 // pred_check_branch
      %72 = sbr.rel (0) target = $region29
    $region28: #{tpu_custom_call.1} parent=1 // pred_region
      %73 = dma.done [#allocation6], 37632
    $region29: #{tpu_custom_call.1} parent=1 // pred_fallthru
      _
    // Predicated region
    $region30: #{tpu_custom_call.1} parent=1 // pred_check
      _
    $region31: #{tpu_custom_call.1} parent=1 // pred_check_branch
      %75 = sbr.rel (0) target = $region33
    $region32: #{tpu_custom_call.1} parent=1 // pred_region
      %76 = dma.done [#allocation6], 48
    $region33: #{tpu_custom_call.1} parent=1 // pred_fallthru
      _
    // Predicated region
    $region34: #{tpu_custom_call.1} parent=1 // pred_check
      _
    $region35: #{tpu_custom_call.1} parent=1 // pred_check_branch
      %78 = sbr.rel (0) target = $region37
    $region36: #{tpu_custom_call.1} parent=1 // pred_region
      %79 = dma.done [#allocation9], 6144
    $region37: #{tpu_custom_call.1} parent=1 // pred_fallthru
      _
    // Predicated region
    $region38: #{tpu_custom_call.1} parent=1 // pred_check
      _
    $region39: #{tpu_custom_call.1} parent=1 // pred_check_branch
      %81 = sbr.rel (0) target = $region41
    $region40: #{tpu_custom_call.1} parent=1 // pred_region
      %82 = dma.done [#allocation9], 16
    $region41: #{tpu_custom_call.1} parent=1 // pred_fallthru
      _
    %v83 = vld [vmem:[#allocation2] sm:$0xff]
    %v84 = vld [vmem:[#allocation2 + $0x8] sm:$0xff]
    %v85 = vld [vmem:[#allocation2 + $0x10] sm:$0xff]
    %v86 = vld [vmem:[#allocation2 + $0x18] sm:$0xff]
    %v87 = vld [vmem:[#allocation2 + $0x20] sm:$0xff]
    %v88 = vld [vmem:[#allocation2 + $0x28] sm:$0xff]
    %v89 = vld [vmem:[#allocation2 + $0x30] sm:$0xff]
    %v90 = vld [vmem:[#allocation5] sm:$0xff]
    %v91 = vld [vmem:[#allocation5 + $0x8] sm:$0xff]
    %v92 = vld [vmem:[#allocation5 + $0x10] sm:$0xff]
    %v93 = vld [vmem:[#allocation5 + $0x18] sm:$0xff]
    %v94 = vld [vmem:[#allocation5 + $0x20] sm:$0xff]
    %v95 = vld [vmem:[#allocation5 + $0x28] sm:$0xff]
    %v96 = vld [vmem:[#allocation5 + $0x30] sm:$0xff]
    %v97 = vld [vmem:[#allocation5 + $0x38] sm:$0xff]
    %v98 = vld [vmem:[#allocation5 + $0x40] sm:$0xff]
    %v99 = vld [vmem:[#allocation5 + $0x48] sm:$0xff]
    %v100 = vld [vmem:[#allocation5 + $0x50] sm:$0xff]
    %v101 = vld [vmem:[#allocation5 + $0x58] sm:$0xff]
    %v102 = vld [vmem:[#allocation5 + $0x60] sm:$0xff]
    %v103 = vld [vmem:[#allocation5 + $0x68] sm:$0xff]
    %v104 = vld [vmem:[#allocation5 + $0x70] sm:$0xff]
    %v105 = vld [vmem:[#allocation5 + $0x78] sm:$0xff]
    %v106 = vld [vmem:[#allocation5 + $0x80] sm:$0xff]
    %v107 = vld [vmem:[#allocation5 + $0x88] sm:$0xff]
    %v108 = vld [vmem:[#allocation5 + $0x90] sm:$0xff]
    %v109 = vld [vmem:[#allocation5 + $0x98] sm:$0xff]
    %v110 = vld [vmem:[#allocation5 + $0xa0] sm:$0xff]
    %v111 = vld [vmem:[#allocation5 + $0xa8] sm:$0xff]
    %v112 = vld [vmem:[#allocation5 + $0xb0] sm:$0xff]
    %v113 = vld [vmem:[#allocation5 + $0xb8] sm:$0xff]
    %v114 = vld [vmem:[#allocation5 + $0xc0] sm:$0xff]
    %v115 = vld [vmem:[#allocation5 + $0xc8] sm:$0xff]
    %v116 = vld [vmem:[#allocation5 + $0xd0] sm:$0xff]
    %v117 = vld [vmem:[#allocation5 + $0xd8] sm:$0xff]
    %v118 = vld [vmem:[#allocation5 + $0xe0] sm:$0xff]
    %v119 = vld [vmem:[#allocation5 + $0xe8] sm:$0xff]
    %v120 = vld [vmem:[#allocation5 + $0xf0] sm:$0xff]
    %v121 = vld [vmem:[#allocation5 + $0xf8] sm:$0xff]
    %v122 = vld [vmem:[#allocation5 + $0x100] sm:$0xff]
    %v123 = vld [vmem:[#allocation5 + $0x108] sm:$0xff]
    %v124 = vld [vmem:[#allocation5 + $0x110] sm:$0xff]
    %v125 = vld [vmem:[#allocation5 + $0x118] sm:$0xff]
    %v126 = vld [vmem:[#allocation5 + $0x120] sm:$0xff]
    %v127 = vld [vmem:[#allocation5 + $0x128] sm:$0xff]
    %v128 = vld [vmem:[#allocation5 + $0x130] sm:$0xff]
    %v129 = vld [vmem:[#allocation5 + $0x138] sm:$0xff]
    %v130 = vld [vmem:[#allocation5 + $0x140] sm:$0xff]
    %v131 = vld [vmem:[#allocation5 + $0x148] sm:$0xff]
    %v132 = vld [vmem:[#allocation5 + $0x150] sm:$0xff]
    %v133 = vld [vmem:[#allocation5 + $0x158] sm:$0xff]
    %v134 = vld [vmem:[#allocation5 + $0x160] sm:$0xff]
    %v135 = vld [vmem:[#allocation5 + $0x168] sm:$0xff]
    %v136 = vld [vmem:[#allocation5 + $0x170] sm:$0xff]
    %v137 = vld [vmem:[#allocation5 + $0x178] sm:$0xff]
    %v138 = vld [vmem:[#allocation5 + $0x180] sm:$0xff]
    %v139 = vld [vmem:[#allocation5 + $0x188] sm:$0xff]
    %v140 = vld [vmem:[#allocation5 + $0x190] sm:$0xff]
    %v141 = vld [vmem:[#allocation5 + $0x198] sm:$0xff]
    %v142 = vld [vmem:[#allocation5 + $0x1a0] sm:$0xff]
    %v143 = vld [vmem:[#allocation5 + $0x1a8] sm:$0xff]
    %v144 = vld [vmem:[#allocation5 + $0x1b0] sm:$0xff]
    %v145 = vld [vmem:[#allocation5 + $0x1b8] sm:$0xff]
    %v146 = vld [vmem:[#allocation5 + $0x1c0] sm:$0xff]
    %v147 = vld [vmem:[#allocation5 + $0x1c8] sm:$0xff]
    %v148 = vld [vmem:[#allocation5 + $0x1d0] sm:$0xff]
    %v149 = vld [vmem:[#allocation5 + $0x1d8] sm:$0xff]
    %v150 = vld [vmem:[#allocation5 + $0x1e0] sm:$0xff]
    %v151 = vld [vmem:[#allocation5 + $0x1e8] sm:$0xff]
    %v152 = vld [vmem:[#allocation5 + $0x1f0] sm:$0xff]
    %v153 = vld [vmem:[#allocation5 + $0x1f8] sm:$0xff]
    %v154 = vld [vmem:[#allocation5 + $0x200] sm:$0xff]
    %v155 = vld [vmem:[#allocation5 + $0x208] sm:$0xff]
    %v156 = vld [vmem:[#allocation5 + $0x210] sm:$0xff]
    %v157 = vld [vmem:[#allocation5 + $0x218] sm:$0xff]
    %v158 = vld [vmem:[#allocation5 + $0x220] sm:$0xff]
    %v159 = vld [vmem:[#allocation5 + $0x228] sm:$0xff]
    %v160 = vld [vmem:[#allocation5 + $0x230] sm:$0xff]
    %v161 = vld [vmem:[#allocation5 + $0x238] sm:$0xff]
    %v162 = vld [vmem:[#allocation5 + $0x240] sm:$0xff]
    %v163 = vld [vmem:[#allocation5 + $0x248] sm:$0xff]
    %v164 = vld [vmem:[#allocation5 + $0x250] sm:$0xff]
    %v165 = vld [vmem:[#allocation5 + $0x258] sm:$0xff]
    %v166 = vld [vmem:[#allocation5 + $0x260] sm:$0xff]
    %v167 = vld [vmem:[#allocation5 + $0x268] sm:$0xff]
    %v168 = vld [vmem:[#allocation5 + $0x270] sm:$0xff]
    %v169 = vld [vmem:[#allocation5 + $0x278] sm:$0xff]
    %v170 = vld [vmem:[#allocation5 + $0x280] sm:$0xff]
    %v171 = vld [vmem:[#allocation5 + $0x288] sm:$0xff]
    %v172 = vld [vmem:[#allocation5 + $0x290] sm:$0xff]
    %v173 = vld [vmem:[#allocation5 + $0x298] sm:$0xff]
    %v174 = vld [vmem:[#allocation5 + $0x2a0] sm:$0xff]
    %v175 = vld [vmem:[#allocation5 + $0x2a8] sm:$0xff]
    %v176 = vld [vmem:[#allocation5 + $0x2b0] sm:$0xff]
    %v177 = vld [vmem:[#allocation5 + $0x2b8] sm:$0xff]
    %v178 = vld [vmem:[#allocation5 + $0x2c0] sm:$0xff]
    %v179 = vld [vmem:[#allocation5 + $0x2c8] sm:$0xff]
    %v180 = vld [vmem:[#allocation5 + $0x2d0] sm:$0xff]
    %v181 = vld [vmem:[#allocation5 + $0x2d8] sm:$0xff]
    %v182 = vld [vmem:[#allocation5 + $0x2e0] sm:$0xff]
    %v183 = vld [vmem:[#allocation5 + $0x2e8] sm:$0xff]
    %v184 = vld [vmem:[#allocation5 + $0x2f0] sm:$0xff]
    %v185 = vld [vmem:[#allocation5 + $0x2f8] sm:$0xff]
    %v186 = vld [vmem:[#allocation5 + $0x300] sm:$0xff]
    %v187 = vld [vmem:[#allocation5 + $0x308] sm:$0xff]
    %v188 = vld [vmem:[#allocation5 + $0x310] sm:$0xff]
    %v189 = vld [vmem:[#allocation5 + $0x318] sm:$0xff]
    %v190 = vld [vmem:[#allocation5 + $0x320] sm:$0xff]
    %v191 = vld [vmem:[#allocation5 + $0x328] sm:$0xff]
    %v192 = vld [vmem:[#allocation5 + $0x330] sm:$0xff]
    %v193 = vld [vmem:[#allocation5 + $0x338] sm:$0xff]
    %v194 = vld [vmem:[#allocation5 + $0x340] sm:$0xff]
    %v195 = vld [vmem:[#allocation5 + $0x348] sm:$0xff]
    %v196 = vld [vmem:[#allocation5 + $0x350] sm:$0xff]
    %v197 = vld [vmem:[#allocation5 + $0x358] sm:$0xff]
    %v198 = vld [vmem:[#allocation5 + $0x360] sm:$0xff]
    %v199 = vld [vmem:[#allocation5 + $0x368] sm:$0xff]
    %v200 = vld [vmem:[#allocation5 + $0x370] sm:$0xff]
    %v201 = vld [vmem:[#allocation5 + $0x378] sm:$0xff]
    %v202 = vld [vmem:[#allocation5 + $0x380] sm:$0xff]
    %v203 = vld [vmem:[#allocation5 + $0x388] sm:$0xff]
    %v204 = vld [vmem:[#allocation5 + $0x390] sm:$0xff]
    %v205 = vld [vmem:[#allocation5 + $0x398] sm:$0xff]
    %v206 = vld [vmem:[#allocation5 + $0x3a0] sm:$0xff]
    %v207 = vld [vmem:[#allocation5 + $0x3a8] sm:$0xff]
    %v208 = vld [vmem:[#allocation5 + $0x3b0] sm:$0xff]
    %v209 = vld [vmem:[#allocation5 + $0x3b8] sm:$0xff]
    %v210 = vld [vmem:[#allocation5 + $0x3c0] sm:$0xff]
    %v211 = vld [vmem:[#allocation5 + $0x3c8] sm:$0xff]
    %v212 = vld [vmem:[#allocation5 + $0x3d0] sm:$0xff]
    %v213 = vld [vmem:[#allocation5 + $0x3d8] sm:$0xff]
    %v214 = vld [vmem:[#allocation5 + $0x3e0] sm:$0xff]
    %v215 = vld [vmem:[#allocation5 + $0x3e8] sm:$0xff]
    %v216 = vld [vmem:[#allocation5 + $0x3f0] sm:$0xff]
    %v217 = vld [vmem:[#allocation5 + $0x3f8] sm:$0xff]
    %v218 = vld [vmem:[#allocation5 + $0x400] sm:$0xff]
    %v219 = vld [vmem:[#allocation5 + $0x408] sm:$0xff]
    %v220 = vld [vmem:[#allocation5 + $0x410] sm:$0xff]
    %v221 = vld [vmem:[#allocation5 + $0x418] sm:$0xff]
    %v222 = vld [vmem:[#allocation5 + $0x420] sm:$0xff]
    %v223 = vld [vmem:[#allocation5 + $0x428] sm:$0xff]
    %v224 = vld [vmem:[#allocation5 + $0x430] sm:$0xff]
    %v225 = vld [vmem:[#allocation5 + $0x438] sm:$0xff]
    %v226 = vld [vmem:[#allocation5 + $0x440] sm:$0xff]
    %v227 = vld [vmem:[#allocation5 + $0x448] sm:$0xff]
    %v228 = vld [vmem:[#allocation5 + $0x450] sm:$0xff]
    %v229 = vld [vmem:[#allocation5 + $0x458] sm:$0xff]
    %v230 = vld [vmem:[#allocation5 + $0x460] sm:$0xff]
    %v231 = vld [vmem:[#allocation5 + $0x468] sm:$0xff]
    %v232 = vld [vmem:[#allocation5 + $0x470] sm:$0xff]
    %v233 = vld [vmem:[#allocation5 + $0x478] sm:$0xff]
    %v234 = vld [vmem:[#allocation5 + $0x480] sm:$0xff]
    %v235 = vld [vmem:[#allocation5 + $0x488] sm:$0xff]
    %v236 = vld [vmem:[#allocation5 + $0x490] sm:$0xff]
    %v237 = vld [vmem:[#allocation5 + $0x498] sm:$0xff]
    %v238 = vld [vmem:[#allocation5 + $0x4a0] sm:$0xff]
    %v239 = vld [vmem:[#allocation5 + $0x4a8] sm:$0xff]
    %v240 = vld [vmem:[#allocation5 + $0x4b0] sm:$0xff]
    %v241 = vld [vmem:[#allocation5 + $0x4b8] sm:$0xff]
    %v242 = vld [vmem:[#allocation5 + $0x4c0] sm:$0xff]
    %v243 = vld [vmem:[#allocation5 + $0x4c8] sm:$0xff]
    %v244 = vld [vmem:[#allocation5 + $0x4d0] sm:$0xff]
    %v245 = vld [vmem:[#allocation5 + $0x4d8] sm:$0xff]
    %v246 = vld [vmem:[#allocation5 + $0x4e0] sm:$0xff]
    %v247 = vld [vmem:[#allocation5 + $0x4e8] sm:$0xff]
    %v248 = vld [vmem:[#allocation5 + $0x4f0] sm:$0xff]
    %v249 = vld [vmem:[#allocation5 + $0x4f8] sm:$0xff]
    %v250 = vld [vmem:[#allocation5 + $0x500] sm:$0xff]
    %v251 = vld [vmem:[#allocation5 + $0x508] sm:$0xff]
    %v252 = vld [vmem:[#allocation5 + $0x510] sm:$0xff]
    %v253 = vld [vmem:[#allocation5 + $0x518] sm:$0xff]
    %v254 = vld [vmem:[#allocation5 + $0x520] sm:$0xff]
    %v255 = vld [vmem:[#allocation5 + $0x528] sm:$0xff]
    %v256 = vld [vmem:[#allocation5 + $0x530] sm:$0xff]
    %v257 = vld [vmem:[#allocation5 + $0x538] sm:$0xff]
    %v258 = vld [vmem:[#allocation5 + $0x540] sm:$0xff]
    %v259 = vld [vmem:[#allocation5 + $0x548] sm:$0xff]
    %v260 = vld [vmem:[#allocation5 + $0x550] sm:$0xff]
    %v261 = vld [vmem:[#allocation5 + $0x558] sm:$0xff]
    %v262 = vld [vmem:[#allocation5 + $0x560] sm:$0xff]
    %v263 = vld [vmem:[#allocation5 + $0x568] sm:$0xff]
    %v264 = vld [vmem:[#allocation5 + $0x570] sm:$0xff]
    %v265 = vld [vmem:[#allocation5 + $0x578] sm:$0xff]
    %v266 = vld [vmem:[#allocation5 + $0x580] sm:$0xff]
    %v267 = vld [vmem:[#allocation5 + $0x588] sm:$0xff]
    %v268 = vld [vmem:[#allocation5 + $0x590] sm:$0xff]
    %v269 = vld [vmem:[#allocation5 + $0x598] sm:$0xff]
    %v270 = vld [vmem:[#allocation5 + $0x5a0] sm:$0xff]
    %v271 = vld [vmem:[#allocation5 + $0x5a8] sm:$0xff]
    %v272 = vld [vmem:[#allocation5 + $0x5b0] sm:$0xff]
    %v273 = vld [vmem:[#allocation5 + $0x5b8] sm:$0xff]
    %v274 = vld [vmem:[#allocation5 + $0x5c0] sm:$0xff]
    %v275 = vld [vmem:[#allocation5 + $0x5c8] sm:$0xff]
    %v276 = vld [vmem:[#allocation5 + $0x5d0] sm:$0xff]
    %v277 = vld [vmem:[#allocation5 + $0x5d8] sm:$0xff]
    %v278 = vld [vmem:[#allocation5 + $0x5e0] sm:$0xff]
    %v279 = vld [vmem:[#allocation5 + $0x5e8] sm:$0xff]
    %v280 = vld [vmem:[#allocation5 + $0x5f0] sm:$0xff]
    %v281 = vld [vmem:[#allocation5 + $0x5f8] sm:$0xff]
    %v282 = vld [vmem:[#allocation5 + $0x600] sm:$0xff]
    %v283 = vld [vmem:[#allocation5 + $0x608] sm:$0xff]
    %v284 = vld [vmem:[#allocation5 + $0x610] sm:$0xff]
    %v285 = vld [vmem:[#allocation5 + $0x618] sm:$0xff]
    %v286 = vld [vmem:[#allocation5 + $0x620] sm:$0xff]
    %v287 = vld [vmem:[#allocation5 + $0x628] sm:$0xff]
    %v288 = vld [vmem:[#allocation5 + $0x630] sm:$0xff]
    %v289 = vld [vmem:[#allocation5 + $0x638] sm:$0xff]
    %v290 = vld [vmem:[#allocation5 + $0x640] sm:$0xff]
    %v291 = vld [vmem:[#allocation5 + $0x648] sm:$0xff]
    %v292 = vld [vmem:[#allocation5 + $0x650] sm:$0xff]
    %v293 = vld [vmem:[#allocation5 + $0x658] sm:$0xff]
    %v294 = vld [vmem:[#allocation5 + $0x660] sm:$0xff]
    %v295 = vld [vmem:[#allocation5 + $0x668] sm:$0xff]
    %v296 = vld [vmem:[#allocation5 + $0x670] sm:$0xff]
    %v297 = vld [vmem:[#allocation5 + $0x678] sm:$0xff]
    %v298 = vld [vmem:[#allocation5 + $0x680] sm:$0xff]
    %v299 = vld [vmem:[#allocation5 + $0x688] sm:$0xff]
    %v300 = vld [vmem:[#allocation5 + $0x690] sm:$0xff]
    %v301 = vld [vmem:[#allocation5 + $0x698] sm:$0xff]
    %v302 = vld [vmem:[#allocation5 + $0x6a0] sm:$0xff]
    %v303 = vld [vmem:[#allocation5 + $0x6a8] sm:$0xff]
    %v304 = vld [vmem:[#allocation5 + $0x6b0] sm:$0xff]
    %v305 = vld [vmem:[#allocation5 + $0x6b8] sm:$0xff]
    %v306 = vld [vmem:[#allocation5 + $0x6c0] sm:$0xff]
    %v307 = vld [vmem:[#allocation5 + $0x6c8] sm:$0xff]
    %v308 = vld [vmem:[#allocation5 + $0x6d0] sm:$0xff]
    %v309 = vld [vmem:[#allocation5 + $0x6d8] sm:$0xff]
    %v310 = vld [vmem:[#allocation5 + $0x6e0] sm:$0xff]
    %v311 = vld [vmem:[#allocation5 + $0x6e8] sm:$0xff]
    %v312 = vld [vmem:[#allocation5 + $0x6f0] sm:$0xff]
    %v313 = vld [vmem:[#allocation5 + $0x6f8] sm:$0xff]
    %v314 = vld [vmem:[#allocation5 + $0x700] sm:$0xff]
    %v315 = vld [vmem:[#allocation5 + $0x708] sm:$0xff]
    %v316 = vld [vmem:[#allocation5 + $0x710] sm:$0xff]
    %v317 = vld [vmem:[#allocation5 + $0x718] sm:$0xff]
    %v318 = vld [vmem:[#allocation5 + $0x720] sm:$0xff]
    %v319 = vld [vmem:[#allocation5 + $0x728] sm:$0xff]
    %v320 = vld [vmem:[#allocation5 + $0x730] sm:$0xff]
    %v321 = vld [vmem:[#allocation5 + $0x738] sm:$0xff]
    %v322 = vld [vmem:[#allocation5 + $0x740] sm:$0xff]
    %v323 = vld [vmem:[#allocation5 + $0x748] sm:$0xff]
    %v324 = vld [vmem:[#allocation5 + $0x750] sm:$0xff]
    %v325 = vld [vmem:[#allocation5 + $0x758] sm:$0xff]
    %v326 = vld [vmem:[#allocation5 + $0x760] sm:$0xff]
    %v327 = vld [vmem:[#allocation5 + $0x768] sm:$0xff]
    %v328 = vld [vmem:[#allocation5 + $0x770] sm:$0xff]
    %v329 = vld [vmem:[#allocation5 + $0x778] sm:$0xff]
    %v330 = vld [vmem:[#allocation5 + $0x780] sm:$0xff]
    %v331 = vld [vmem:[#allocation5 + $0x788] sm:$0xff]
    %v332 = vld [vmem:[#allocation5 + $0x790] sm:$0xff]
    %v333 = vld [vmem:[#allocation5 + $0x798] sm:$0xff]
    %v334 = vld [vmem:[#allocation5 + $0x7a0] sm:$0xff]
    %v335 = vld [vmem:[#allocation5 + $0x7a8] sm:$0xff]
    %v336 = vld [vmem:[#allocation5 + $0x7b0] sm:$0xff]
    %v337 = vld [vmem:[#allocation5 + $0x7b8] sm:$0xff]
    %v338 = vld [vmem:[#allocation5 + $0x7c0] sm:$0xff]
    %v339 = vld [vmem:[#allocation5 + $0x7c8] sm:$0xff]
    %v340 = vld [vmem:[#allocation5 + $0x7d0] sm:$0xff]
    %v341 = vld [vmem:[#allocation5 + $0x7d8] sm:$0xff]
    %v342 = vld [vmem:[#allocation5 + $0x7e0] sm:$0xff]
    %v343 = vld [vmem:[#allocation5 + $0x7e8] sm:$0xff]
    %v344 = vld [vmem:[#allocation5 + $0x7f0] sm:$0xff]
    %v345 = vld [vmem:[#allocation5 + $0x7f8] sm:$0xff]
    %v346 = vld [vmem:[#allocation5 + $0x800] sm:$0xff]
    %v347 = vld [vmem:[#allocation5 + $0x808] sm:$0xff]
    %v348 = vld [vmem:[#allocation5 + $0x810] sm:$0xff]
    %v349 = vld [vmem:[#allocation5 + $0x818] sm:$0xff]
    %v350 = vld [vmem:[#allocation5 + $0x820] sm:$0xff]
    %v351 = vld [vmem:[#allocation5 + $0x828] sm:$0xff]
    %v352 = vld [vmem:[#allocation5 + $0x830] sm:$0xff]
    %v353 = vld [vmem:[#allocation5 + $0x838] sm:$0xff]
    %v354 = vld [vmem:[#allocation5 + $0x840] sm:$0xff]
    %v355 = vld [vmem:[#allocation5 + $0x848] sm:$0xff]
    %v356 = vld [vmem:[#allocation5 + $0x850] sm:$0xff]
    %v357 = vld [vmem:[#allocation5 + $0x858] sm:$0xff]
    %v358 = vld [vmem:[#allocation5 + $0x860] sm:$0xff]
    %v359 = vld [vmem:[#allocation5 + $0x868] sm:$0xff]
    %v360 = vld [vmem:[#allocation5 + $0x870] sm:$0xff]
    %v361 = vld [vmem:[#allocation5 + $0x878] sm:$0xff]
    %v362 = vld [vmem:[#allocation5 + $0x880] sm:$0xff]
    %v363 = vld [vmem:[#allocation5 + $0x888] sm:$0xff]
    %v364 = vld [vmem:[#allocation5 + $0x890] sm:$0xff]
    %v365 = vld [vmem:[#allocation5 + $0x898] sm:$0xff]
    %v366 = vld [vmem:[#allocation5 + $0x8a0] sm:$0xff]
    %v367 = vld [vmem:[#allocation5 + $0x8a8] sm:$0xff]
    %v368 = vld [vmem:[#allocation5 + $0x8b0] sm:$0xff]
    %v369 = vld [vmem:[#allocation5 + $0x8b8] sm:$0xff]
    %v370 = vld [vmem:[#allocation5 + $0x8c0] sm:$0xff]
    %v371 = vld [vmem:[#allocation5 + $0x8c8] sm:$0xff]
    %v372 = vld [vmem:[#allocation5 + $0x8d0] sm:$0xff]
    %v373 = vld [vmem:[#allocation5 + $0x8d8] sm:$0xff]
    %v374 = vld [vmem:[#allocation5 + $0x8e0] sm:$0xff]
    %v375 = vld [vmem:[#allocation5 + $0x8e8] sm:$0xff]
    %v376 = vld [vmem:[#allocation5 + $0x8f0] sm:$0xff]
    %v377 = vld [vmem:[#allocation5 + $0x8f8] sm:$0xff]
    %v378 = vld [vmem:[#allocation5 + $0x900] sm:$0xff]
    %v379 = vld [vmem:[#allocation5 + $0x908] sm:$0xff]
    %v380 = vld [vmem:[#allocation5 + $0x910] sm:$0xff]
    %v381 = vld [vmem:[#allocation5 + $0x918] sm:$0xff]
    %v382 = vld [vmem:[#allocation5 + $0x920] sm:$0xff]
    %v383 = vld [vmem:[#allocation5 + $0x928] sm:$0xff]
    %v384 = vld [vmem:[#allocation7] sm:$0x7]
    %v386 = vlaneseq
    %v387 = vshrl.u32 %v386, 7
    %v388 = vsub.s32 0, %v387
    %v389 = vrot.slane %v384, %v388
    %v390 = vlaneseq
    %v391 = vshrl.u32 %v390, 7
    %v392 = vsub.s32 1, %v391
    %v393 = vrot.slane %v384, %v392
    %v394 = vlaneseq
    %v395 = vshrl.u32 %v394, 7
    %v396 = vsub.s32 2, %v395
    %v397 = vrot.slane %v384, %v396
    %vm401 = vcmask 130048
    %v403 = vsel %vm401, %v89, 0
    %405 = vmatprep.subr.mxu0 %v91
    %406 = vmatpush1.msra.mxu0 %v90
    %407 = vmatprep.subr.mxu0 %v94
    %408 = vmatpush1.msra.mxu0 %v93
    %409 = vmatprep.subr.mxu0 %v97
    %410 = vmatpush1.msra.mxu0 %v96
    %411 = vmatprep.subr.mxu0 %v100
    %412 = vmatpush1.msra.mxu0 %v99
    %413 = vmatprep.subr.mxu0 %v103
    %414 = vmatpush1.msra.mxu0 %v102
    %415 = vmatprep.subr.mxu0 %v106
    %416 = vmatpush1.msra.mxu0 %v105
    %417 = vmatprep.subr.mxu0 %v109
    %418 = vmatpush1.msra.mxu0 %v108
    %419 = vmatprep.subr.mxu0 %v112
    %420 = vmatpush1.msra.mxu0 %v111
    %421 = vmatprep.subr.mxu0 %v115
    %422 = vmatpush1.msra.mxu0 %v114
    %423 = vmatprep.subr.mxu0 %v118
    %424 = vmatpush1.msra.mxu0 %v117
    %425 = vmatprep.subr.mxu0 %v121
    %426 = vmatpush1.msra.mxu0 %v120
    %427 = vmatprep.subr.mxu0 %v124
    %428 = vmatpush1.msra.mxu0 %v123
    %429 = vmatprep.subr.mxu0 %v127
    %430 = vmatpush1.msra.mxu0 %v126
    %431 = vmatprep.subr.mxu0 %v130
    %432 = vmatpush1.msra.mxu0 %v129
    %433 = vmatprep.subr.mxu0 %v133
    %434 = vmatpush1.msra.mxu0 %v132
    %435 = vmatprep.subr.mxu0 %v136
    %436 = vmatpush1.msra.mxu0 %v135
    %437 = vmatprep.subr.mxu0 %v139
    %438 = vmatpush1.msra.mxu0 %v138
    %439 = vmatprep.subr.mxu0 %v142
    %440 = vmatpush1.msra.mxu0 %v141
    %441 = vmatprep.subr.mxu0 %v145
    %442 = vmatpush1.msra.mxu0 %v144
    %443 = vmatprep.subr.mxu0 %v148
    %444 = vmatpush1.msra.mxu0 %v147
    %445 = vmatprep.subr.mxu0 %v151
    %446 = vmatpush1.msra.mxu0 %v150
    %447 = vmatprep.subr.mxu0 %v154
    %448 = vmatpush1.msra.mxu0 %v153
    %449 = vmatprep.subr.mxu0 %v157
    %450 = vmatpush1.msra.mxu0 %v156
    %451 = vmatprep.subr.mxu0 %v160
    %452 = vmatpush1.msra.mxu0 %v159
    %453 = vmatprep.subr.mxu0 %v163
    %454 = vmatpush1.msra.mxu0 %v162
    %455 = vmatprep.subr.mxu0 %v166
    %456 = vmatpush1.msra.mxu0 %v165
    %457 = vmatprep.subr.mxu0 %v169
    %458 = vmatpush1.msra.mxu0 %v168
    %459 = vmatprep.subr.mxu0 %v172
    %460 = vmatpush1.msra.mxu0 %v171
    %461 = vmatprep.subr.mxu0 %v175
    %462 = vmatpush1.msra.mxu0 %v174
    %463 = vmatprep.subr.mxu0 %v178
    %464 = vmatpush1.msra.mxu0 %v177
    %465 = vmatprep.subr.mxu0 %v181
    %466 = vmatpush1.msra.mxu0 %v180
    %467 = vmatprep.subr.mxu0 %v184
    %468 = vmatpush1.msra.mxu0 %v183
    %469 = vmatprep.mubr.f32.mxu0 %v84
    %470 = vmatmul.mubr.f32.gmra.mrb[0].mxu0 %v83
    %v471 = vpop.f32.mrb[0].mxu0
    %v472 = vadd.f32 %v389, %v471
    %v473 = vpop.f32.mrb[0].mxu0
    %v474 = vadd.f32 %v393, %v473
    %475 = vdwg.mxu0
    %476 = vmatprep.subr.mxu0 %v187
    %477 = vmatpush1.msra.mxu0 %v186
    %478 = vmatprep.subr.mxu0 %v190
    %479 = vmatpush1.msra.mxu0 %v189
    %480 = vmatprep.subr.mxu0 %v193
    %481 = vmatpush1.msra.mxu0 %v192
    %482 = vmatprep.subr.mxu0 %v196
    %483 = vmatpush1.msra.mxu0 %v195
    %484 = vmatprep.subr.mxu0 %v199
    %485 = vmatpush1.msra.mxu0 %v198
    %486 = vmatprep.subr.mxu0 %v202
    %487 = vmatpush1.msra.mxu0 %v201
    %488 = vmatprep.subr.mxu0 %v205
    %489 = vmatpush1.msra.mxu0 %v204
    %490 = vmatprep.subr.mxu0 %v208
    %491 = vmatpush1.msra.mxu0 %v207
    %492 = vmatprep.subr.mxu0 %v211
    %493 = vmatpush1.msra.mxu0 %v210
    %494 = vmatprep.subr.mxu0 %v214
    %495 = vmatpush1.msra.mxu0 %v213
    %496 = vmatprep.subr.mxu0 %v217
    %497 = vmatpush1.msra.mxu0 %v216
    %498 = vmatprep.subr.mxu0 %v220
    %499 = vmatpush1.msra.mxu0 %v219
    %500 = vmatprep.subr.mxu0 %v223
    %501 = vmatpush1.msra.mxu0 %v222
    %502 = vmatprep.subr.mxu0 %v226
    %503 = vmatpush1.msra.mxu0 %v225
    %504 = vmatprep.subr.mxu0 %v229
    %505 = vmatpush1.msra.mxu0 %v228
    %506 = vmatprep.subr.mxu0 %v232
    %507 = vmatpush1.msra.mxu0 %v231
    %508 = vmatprep.subr.mxu0 %v235
    %509 = vmatpush1.msra.mxu0 %v234
    %510 = vmatprep.subr.mxu0 %v238
    %511 = vmatpush1.msra.mxu0 %v237
    %512 = vmatprep.subr.mxu0 %v241
    %513 = vmatpush1.msra.mxu0 %v240
    %514 = vmatprep.subr.mxu0 %v244
    %515 = vmatpush1.msra.mxu0 %v243
    %516 = vmatprep.subr.mxu0 %v247
    %517 = vmatpush1.msra.mxu0 %v246
    %518 = vmatprep.subr.mxu0 %v250
    %519 = vmatpush1.msra.mxu0 %v249
    %520 = vmatprep.subr.mxu0 %v253
    %521 = vmatpush1.msra.mxu0 %v252
    %522 = vmatprep.subr.mxu0 %v256
    %523 = vmatpush1.msra.mxu0 %v255
    %524 = vmatprep.subr.mxu0 %v259
    %525 = vmatpush1.msra.mxu0 %v258
    %526 = vmatprep.subr.mxu0 %v262
    %527 = vmatpush1.msra.mxu0 %v261
    %528 = vmatprep.subr.mxu0 %v265
    %529 = vmatpush1.msra.mxu0 %v264
    %530 = vmatprep.subr.mxu0 %v268
    %531 = vmatpush1.msra.mxu0 %v267
    %532 = vmatprep.subr.mxu0 %v271
    %533 = vmatpush1.msra.mxu0 %v270
    %534 = vmatprep.subr.mxu0 %v274
    %535 = vmatpush1.msra.mxu0 %v273
    %536 = vmatprep.subr.mxu0 %v277
    %537 = vmatpush1.msra.mxu0 %v276
    %538 = vmatprep.subr.mxu0 %v280
    %539 = vmatpush1.msra.mxu0 %v279
    %540 = vmatprep.mubr.f32.mxu0 %v86
    %541 = vmatmul.mubr.f32.gmra.mrb[0].mxu0 %v85
    %v542 = vpop.f32.mrb[0].mxu0
    %v543 = vadd.f32 %v472, %v542
    %v544 = vpop.f32.mrb[0].mxu0
    %v545 = vadd.f32 %v474, %v544
    %546 = vdwg.mxu0
    %547 = vmatprep.subr.mxu0 %v283
    %548 = vmatpush1.msra.mxu0 %v282
    %549 = vmatprep.subr.mxu0 %v286
    %550 = vmatpush1.msra.mxu0 %v285
    %551 = vmatprep.subr.mxu0 %v289
    %552 = vmatpush1.msra.mxu0 %v288
    %553 = vmatprep.subr.mxu0 %v292
    %554 = vmatpush1.msra.mxu0 %v291
    %555 = vmatprep.subr.mxu0 %v295
    %556 = vmatpush1.msra.mxu0 %v294
    %557 = vmatprep.subr.mxu0 %v298
    %558 = vmatpush1.msra.mxu0 %v297
    %559 = vmatprep.subr.mxu0 %v301
    %560 = vmatpush1.msra.mxu0 %v300
    %561 = vmatprep.subr.mxu0 %v304
    %562 = vmatpush1.msra.mxu0 %v303
    %563 = vmatprep.subr.mxu0 %v307
    %564 = vmatpush1.msra.mxu0 %v306
    %565 = vmatprep.subr.mxu0 %v310
    %566 = vmatpush1.msra.mxu0 %v309
    %567 = vmatprep.subr.mxu0 %v313
    %568 = vmatpush1.msra.mxu0 %v312
    %569 = vmatprep.subr.mxu0 %v316
    %570 = vmatpush1.msra.mxu0 %v315
    %571 = vmatprep.subr.mxu0 %v319
    %572 = vmatpush1.msra.mxu0 %v318
    %573 = vmatprep.subr.mxu0 %v322
    %574 = vmatpush1.msra.mxu0 %v321
    %575 = vmatprep.subr.mxu0 %v325
    %576 = vmatpush1.msra.mxu0 %v324
    %577 = vmatprep.subr.mxu0 %v328
    %578 = vmatpush1.msra.mxu0 %v327
    %579 = vmatprep.subr.mxu0 %v331
    %580 = vmatpush1.msra.mxu0 %v330
    %581 = vmatprep.subr.mxu0 %v334
    %582 = vmatpush1.msra.mxu0 %v333
    %583 = vmatprep.subr.mxu0 %v337
    %584 = vmatpush1.msra.mxu0 %v336
    %585 = vmatprep.subr.mxu0 %v340
    %586 = vmatpush1.msra.mxu0 %v339
    %587 = vmatprep.subr.mxu0 %v343
    %588 = vmatpush1.msra.mxu0 %v342
    %589 = vmatprep.subr.mxu0 %v346
    %590 = vmatpush1.msra.mxu0 %v345
    %591 = vmatprep.subr.mxu0 %v349
    %592 = vmatpush1.msra.mxu0 %v348
    %593 = vmatprep.subr.mxu0 %v352
    %594 = vmatpush1.msra.mxu0 %v351
    %595 = vmatprep.subr.mxu0 %v355
    %596 = vmatpush1.msra.mxu0 %v354
    %597 = vmatprep.subr.mxu0 %v358
    %598 = vmatpush1.msra.mxu0 %v357
    %599 = vmatprep.subr.mxu0 %v361
    %600 = vmatpush1.msra.mxu0 %v360
    %601 = vmatprep.subr.mxu0 %v364
    %602 = vmatpush1.msra.mxu0 %v363
    %603 = vmatprep.subr.mxu0 %v367
    %604 = vmatpush1.msra.mxu0 %v366
    %605 = vmatprep.subr.mxu0 %v370
    %606 = vmatpush1.msra.mxu0 %v369
    %607 = vmatprep.subr.mxu0 %v373
    %608 = vmatpush1.msra.mxu0 %v372
    %609 = vmatprep.subr.mxu0 %v376
    %610 = vmatpush1.msra.mxu0 %v375
    %611 = vmatprep.mubr.f32.mxu0 %v88
    %612 = vmatmul.mubr.f32.gmra.mrb[0].mxu0 %v87
    %v613 = vpop.f32.mrb[0].mxu0
    %v614 = vadd.f32 %v543, %v613
    %v615 = vpop.f32.mrb[0].mxu0
    %v616 = vadd.f32 %v545, %v615
    %617 = vdwg.mxu0
    %618 = vmatprep.subr.mxu0 %v379
    %619 = vmatpush1.msra.mxu0 %v378
    %620 = vmatprep.subr.mxu0 %v382
    %621 = vmatpush1.msra.mxu0 %v381
    %622 = vmatprep.subr.mxu0 0.0
    %623 = vmatpush1.msra.mxu0 0.0
    %624 = vmatprep.subr.mxu0 0.0
    %625 = vmatpush1.msra.mxu0 0.0
    %626 = vmatprep.subr.mxu0 0.0
    %627 = vmatpush1.msra.mxu0 0.0
    %628 = vmatprep.subr.mxu0 0.0
    %629 = vmatpush1.msra.mxu0 0.0
    %630 = vmatprep.subr.mxu0 0.0
    %631 = vmatpush1.msra.mxu0 0.0
    %632 = vmatprep.subr.mxu0 0.0
    %633 = vmatpush1.msra.mxu0 0.0
    %634 = vmatprep.subr.mxu0 0.0
    %635 = vmatpush1.msra.mxu0 0.0
    %636 = vmatprep.subr.mxu0 0.0
    %637 = vmatpush1.msra.mxu0 0.0
    %638 = vmatprep.subr.mxu0 0.0
    %639 = vmatpush1.msra.mxu0 0.0
    %640 = vmatprep.subr.mxu0 0.0
    %641 = vmatpush1.msra.mxu0 0.0
    %642 = vmatprep.subr.mxu0 0.0
    %643 = vmatpush1.msra.mxu0 0.0
    %644 = vmatprep.subr.mxu0 0.0
    %645 = vmatpush1.msra.mxu0 0.0
    %646 = vmatprep.subr.mxu0 0.0
    %647 = vmatpush1.msra.mxu0 0.0
    %648 = vmatprep.subr.mxu0 0.0
    %649 = vmatpush1.msra.mxu0 0.0
    %650 = vmatprep.subr.mxu0 0.0
    %651 = vmatpush1.msra.mxu0 0.0
    %652 = vmatprep.subr.mxu0 0.0
    %653 = vmatpush1.msra.mxu0 0.0
    %654 = vmatprep.subr.mxu0 0.0
    %655 = vmatpush1.msra.mxu0 0.0
    %656 = vmatprep.subr.mxu0 0.0
    %657 = vmatpush1.msra.mxu0 0.0
    %658 = vmatprep.subr.mxu0 0.0
    %659 = vmatpush1.msra.mxu0 0.0
    %660 = vmatprep.subr.mxu0 0.0
    %661 = vmatpush1.msra.mxu0 0.0
    %662 = vmatprep.subr.mxu0 0.0
    %663 = vmatpush1.msra.mxu0 0.0
    %664 = vmatprep.subr.mxu0 0.0
    %665 = vmatpush1.msra.mxu0 0.0
    %666 = vmatprep.subr.mxu0 0.0
    %667 = vmatpush1.msra.mxu0 0.0
    %668 = vmatprep.subr.mxu0 0.0
    %669 = vmatpush1.msra.mxu0 0.0
    %670 = vmatprep.subr.mxu0 0.0
    %671 = vmatpush1.msra.mxu0 0.0
    %672 = vmatprep.subr.mxu0 0.0
    %673 = vmatpush1.msra.mxu0 0.0
    %674 = vmatprep.subr.mxu0 0.0
    %675 = vmatpush1.msra.mxu0 0.0
    %676 = vmatprep.subr.mxu0 0.0
    %677 = vmatpush1.msra.mxu0 0.0
    %678 = vmatprep.subr.mxu0 0.0
    %679 = vmatpush1.msra.mxu0 0.0
    %680 = vmatprep.subr.mxu0 0.0
    %681 = vmatpush1.msra.mxu0 0.0
    %682 = vmatprep.mubr.f32.mxu0 0.0
    %683 = vmatmul.mubr.f32.gmra.mrb[0].mxu0 %v403
    %v684 = vpop.f32.mrb[0].mxu0
    %v685 = vadd.f32 %v614, %v684
    %v686 = vpop.f32.mrb[0].mxu0
    %v687 = vadd.f32 %v616, %v686
    %688 = vdwg.mxu0
    %689 = vmatprep.subr.mxu0 0.0
    %690 = vmatpush1.msra.mxu0 %v92
    %691 = vmatprep.subr.mxu0 0.0
    %692 = vmatpush1.msra.mxu0 %v95
    %693 = vmatprep.subr.mxu0 0.0
    %694 = vmatpush1.msra.mxu0 %v98
    %695 = vmatprep.subr.mxu0 0.0
    %696 = vmatpush1.msra.mxu0 %v101
    %697 = vmatprep.subr.mxu0 0.0
    %698 = vmatpush1.msra.mxu0 %v104
    %699 = vmatprep.subr.mxu0 0.0
    %700 = vmatpush1.msra.mxu0 %v107
    %701 = vmatprep.subr.mxu0 0.0
    %702 = vmatpush1.msra.mxu0 %v110
    %703 = vmatprep.subr.mxu0 0.0
    %704 = vmatpush1.msra.mxu0 %v113
    %705 = vmatprep.subr.mxu0 0.0
    %706 = vmatpush1.msra.mxu0 %v116
    %707 = vmatprep.subr.mxu0 0.0
    %708 = vmatpush1.msra.mxu0 %v119
    %709 = vmatprep.subr.mxu0 0.0
    %710 = vmatpush1.msra.mxu0 %v122
    %711 = vmatprep.subr.mxu0 0.0
    %712 = vmatpush1.msra.mxu0 %v125
    %713 = vmatprep.subr.mxu0 0.0
    %714 = vmatpush1.msra.mxu0 %v128
    %715 = vmatprep.subr.mxu0 0.0
    %716 = vmatpush1.msra.mxu0 %v131
    %717 = vmatprep.subr.mxu0 0.0
    %718 = vmatpush1.msra.mxu0 %v134
    %719 = vmatprep.subr.mxu0 0.0
    %720 = vmatpush1.msra.mxu0 %v137
    %721 = vmatprep.subr.mxu0 0.0
    %722 = vmatpush1.msra.mxu0 %v140
    %723 = vmatprep.subr.mxu0 0.0
    %724 = vmatpush1.msra.mxu0 %v143
    %725 = vmatprep.subr.mxu0 0.0
    %726 = vmatpush1.msra.mxu0 %v146
    %727 = vmatprep.subr.mxu0 0.0
    %728 = vmatpush1.msra.mxu0 %v149
    %729 = vmatprep.subr.mxu0 0.0
    %730 = vmatpush1.msra.mxu0 %v152
    %731 = vmatprep.subr.mxu0 0.0
    %732 = vmatpush1.msra.mxu0 %v155
    %733 = vmatprep.subr.mxu0 0.0
    %734 = vmatpush1.msra.mxu0 %v158
    %735 = vmatprep.subr.mxu0 0.0
    %736 = vmatpush1.msra.mxu0 %v161
    %737 = vmatprep.subr.mxu0 0.0
    %738 = vmatpush1.msra.mxu0 %v164
    %739 = vmatprep.subr.mxu0 0.0
    %740 = vmatpush1.msra.mxu0 %v167
    %741 = vmatprep.subr.mxu0 0.0
    %742 = vmatpush1.msra.mxu0 %v170
    %743 = vmatprep.subr.mxu0 0.0
    %744 = vmatpush1.msra.mxu0 %v173
    %745 = vmatprep.subr.mxu0 0.0
    %746 = vmatpush1.msra.mxu0 %v176
    %747 = vmatprep.subr.mxu0 0.0
    %748 = vmatpush1.msra.mxu0 %v179
    %749 = vmatprep.subr.mxu0 0.0
    %750 = vmatpush1.msra.mxu0 %v182
    %751 = vmatprep.subr.mxu0 0.0
    %752 = vmatpush1.msra.mxu0 %v185
    %753 = vmatprep.mubr.f32.mxu0 %v84
    %754 = vmatmul.mubr.f32.gmra.mrb[0].mxu0 %v83
    %v755 = vpop.f32.mrb[0].mxu0
    %v756 = vadd.f32 %v397, %v755
    %v757 = vpop.f32.mrb[0].mxu0
    %758 = vdwg.mxu0
    %759 = vmatprep.subr.mxu0 0.0
    %760 = vmatpush1.msra.mxu0 %v188
    %761 = vmatprep.subr.mxu0 0.0
    %762 = vmatpush1.msra.mxu0 %v191
    %763 = vmatprep.subr.mxu0 0.0
    %764 = vmatpush1.msra.mxu0 %v194
    %765 = vmatprep.subr.mxu0 0.0
    %766 = vmatpush1.msra.mxu0 %v197
    %767 = vmatprep.subr.mxu0 0.0
    %768 = vmatpush1.msra.mxu0 %v200
    %769 = vmatprep.subr.mxu0 0.0
    %770 = vmatpush1.msra.mxu0 %v203
    %771 = vmatprep.subr.mxu0 0.0
    %772 = vmatpush1.msra.mxu0 %v206
    %773 = vmatprep.subr.mxu0 0.0
    %774 = vmatpush1.msra.mxu0 %v209
    %775 = vmatprep.subr.mxu0 0.0
    %776 = vmatpush1.msra.mxu0 %v212
    %777 = vmatprep.subr.mxu0 0.0
    %778 = vmatpush1.msra.mxu0 %v215
    %779 = vmatprep.subr.mxu0 0.0
    %780 = vmatpush1.msra.mxu0 %v218
    %781 = vmatprep.subr.mxu0 0.0
    %782 = vmatpush1.msra.mxu0 %v221
    %783 = vmatprep.subr.mxu0 0.0
    %784 = vmatpush1.msra.mxu0 %v224
    %785 = vmatprep.subr.mxu0 0.0
    %786 = vmatpush1.msra.mxu0 %v227
    %787 = vmatprep.subr.mxu0 0.0
    %788 = vmatpush1.msra.mxu0 %v230
    %789 = vmatprep.subr.mxu0 0.0
    %790 = vmatpush1.msra.mxu0 %v233
    %791 = vmatprep.subr.mxu0 0.0
    %792 = vmatpush1.msra.mxu0 %v236
    %793 = vmatprep.subr.mxu0 0.0
    %794 = vmatpush1.msra.mxu0 %v239
    %795 = vmatprep.subr.mxu0 0.0
    %796 = vmatpush1.msra.mxu0 %v242
    %797 = vmatprep.subr.mxu0 0.0
    %798 = vmatpush1.msra.mxu0 %v245
    %799 = vmatprep.subr.mxu0 0.0
    %800 = vmatpush1.msra.mxu0 %v248
    %801 = vmatprep.subr.mxu0 0.0
    %802 = vmatpush1.msra.mxu0 %v251
    %803 = vmatprep.subr.mxu0 0.0
    %804 = vmatpush1.msra.mxu0 %v254
    %805 = vmatprep.subr.mxu0 0.0
    %806 = vmatpush1.msra.mxu0 %v257
    %807 = vmatprep.subr.mxu0 0.0
    %808 = vmatpush1.msra.mxu0 %v260
    %809 = vmatprep.subr.mxu0 0.0
    %810 = vmatpush1.msra.mxu0 %v263
    %811 = vmatprep.subr.mxu0 0.0
    %812 = vmatpush1.msra.mxu0 %v266
    %813 = vmatprep.subr.mxu0 0.0
    %814 = vmatpush1.msra.mxu0 %v269
    %815 = vmatprep.subr.mxu0 0.0
    %816 = vmatpush1.msra.mxu0 %v272
    %817 = vmatprep.subr.mxu0 0.0
    %818 = vmatpush1.msra.mxu0 %v275
    %819 = vmatprep.subr.mxu0 0.0
    %820 = vmatpush1.msra.mxu0 %v278
    %821 = vmatprep.subr.mxu0 0.0
    %822 = vmatpush1.msra.mxu0 %v281
    %823 = vmatprep.mubr.f32.mxu0 %v86
    %824 = vmatmul.mubr.f32.gmra.mrb[0].mxu0 %v85
    %v825 = vpop.f32.mrb[0].mxu0
    %v826 = vadd.f32 %v756, %v825
    %v827 = vpop.f32.mrb[0].mxu0
    %828 = vdwg.mxu0
    %829 = vmatprep.subr.mxu0 0.0
    %830 = vmatpush1.msra.mxu0 %v284
    %831 = vmatprep.subr.mxu0 0.0
    %832 = vmatpush1.msra.mxu0 %v287
    %833 = vmatprep.subr.mxu0 0.0
    %834 = vmatpush1.msra.mxu0 %v290
    %835 = vmatprep.subr.mxu0 0.0
    %836 = vmatpush1.msra.mxu0 %v293
    %837 = vmatprep.subr.mxu0 0.0
    %838 = vmatpush1.msra.mxu0 %v296
    %839 = vmatprep.subr.mxu0 0.0
    %840 = vmatpush1.msra.mxu0 %v299
    %841 = vmatprep.subr.mxu0 0.0
    %842 = vmatpush1.msra.mxu0 %v302
    %843 = vmatprep.subr.mxu0 0.0
    %844 = vmatpush1.msra.mxu0 %v305
    %845 = vmatprep.subr.mxu0 0.0
    %846 = vmatpush1.msra.mxu0 %v308
    %847 = vmatprep.subr.mxu0 0.0
    %848 = vmatpush1.msra.mxu0 %v311
    %849 = vmatprep.subr.mxu0 0.0
    %850 = vmatpush1.msra.mxu0 %v314
    %851 = vmatprep.subr.mxu0 0.0
    %852 = vmatpush1.msra.mxu0 %v317
    %853 = vmatprep.subr.mxu0 0.0
    %854 = vmatpush1.msra.mxu0 %v320
    %855 = vmatprep.subr.mxu0 0.0
    %856 = vmatpush1.msra.mxu0 %v323
    %857 = vmatprep.subr.mxu0 0.0
    %858 = vmatpush1.msra.mxu0 %v326
    %859 = vmatprep.subr.mxu0 0.0
    %860 = vmatpush1.msra.mxu0 %v329
    %861 = vmatprep.subr.mxu0 0.0
    %862 = vmatpush1.msra.mxu0 %v332
    %863 = vmatprep.subr.mxu0 0.0
    %864 = vmatpush1.msra.mxu0 %v335
    %865 = vmatprep.subr.mxu0 0.0
    %866 = vmatpush1.msra.mxu0 %v338
    %867 = vmatprep.subr.mxu0 0.0
    %868 = vmatpush1.msra.mxu0 %v341
    %869 = vmatprep.subr.mxu0 0.0
    %870 = vmatpush1.msra.mxu0 %v344
    %871 = vmatprep.subr.mxu0 0.0
    %872 = vmatpush1.msra.mxu0 %v347
    %873 = vmatprep.subr.mxu0 0.0
    %874 = vmatpush1.msra.mxu0 %v350
    %875 = vmatprep.subr.mxu0 0.0
    %876 = vmatpush1.msra.mxu0 %v353
    %877 = vmatprep.subr.mxu0 0.0
    %878 = vmatpush1.msra.mxu0 %v356
    %879 = vmatprep.subr.mxu0 0.0
    %880 = vmatpush1.msra.mxu0 %v359
    %881 = vmatprep.subr.mxu0 0.0
    %882 = vmatpush1.msra.mxu0 %v362
    %883 = vmatprep.subr.mxu0 0.0
    %884 = vmatpush1.msra.mxu0 %v365
    %885 = vmatprep.subr.mxu0 0.0
    %886 = vmatpush1.msra.mxu0 %v368
    %887 = vmatprep.subr.mxu0 0.0
    %888 = vmatpush1.msra.mxu0 %v371
    %889 = vmatprep.subr.mxu0 0.0
    %890 = vmatpush1.msra.mxu0 %v374
    %891 = vmatprep.subr.mxu0 0.0
    %892 = vmatpush1.msra.mxu0 %v377
    %893 = vmatprep.mubr.f32.mxu0 %v88
    %894 = vmatmul.mubr.f32.gmra.mrb[0].mxu0 %v87
    %v895 = vpop.f32.mrb[0].mxu0
    %v896 = vadd.f32 %v826, %v895
    %v897 = vpop.f32.mrb[0].mxu0
    %898 = vdwg.mxu0
    %899 = vmatprep.subr.mxu0 0.0
    %900 = vmatpush1.msra.mxu0 %v380
    %901 = vmatprep.subr.mxu0 0.0
    %902 = vmatpush1.msra.mxu0 %v383
    %903 = vmatprep.subr.mxu0 0.0
    %904 = vmatpush1.msra.mxu0 0.0
    %905 = vmatprep.subr.mxu0 0.0
    %906 = vmatpush1.msra.mxu0 0.0
    %907 = vmatprep.subr.mxu0 0.0
    %908 = vmatpush1.msra.mxu0 0.0
    %909 = vmatprep.subr.mxu0 0.0
    %910 = vmatpush1.msra.mxu0 0.0
    %911 = vmatprep.subr.mxu0 0.0
    %912 = vmatpush1.msra.mxu0 0.0
    %913 = vmatprep.subr.mxu0 0.0
    %914 = vmatpush1.msra.mxu0 0.0
    %915 = vmatprep.subr.mxu0 0.0
    %916 = vmatpush1.msra.mxu0 0.0
    %917 = vmatprep.subr.mxu0 0.0
    %918 = vmatpush1.msra.mxu0 0.0
    %919 = vmatprep.subr.mxu0 0.0
    %920 = vmatpush1.msra.mxu0 0.0
    %921 = vmatprep.subr.mxu0 0.0
    %922 = vmatpush1.msra.mxu0 0.0
    %923 = vmatprep.subr.mxu0 0.0
    %924 = vmatpush1.msra.mxu0 0.0
    %925 = vmatprep.subr.mxu0 0.0
    %926 = vmatpush1.msra.mxu0 0.0
    %927 = vmatprep.subr.mxu0 0.0
    %928 = vmatpush1.msra.mxu0 0.0
    %929 = vmatprep.subr.mxu0 0.0
    %930 = vmatpush1.msra.mxu0 0.0
    %931 = vmatprep.subr.mxu0 0.0
    %932 = vmatpush1.msra.mxu0 0.0
    %933 = vmatprep.subr.mxu0 0.0
    %934 = vmatpush1.msra.mxu0 0.0
    %935 = vmatprep.subr.mxu0 0.0
    %936 = vmatpush1.msra.mxu0 0.0
    %937 = vmatprep.subr.mxu0 0.0
    %938 = vmatpush1.msra.mxu0 0.0
    %939 = vmatprep.subr.mxu0 0.0
    %940 = vmatpush1.msra.mxu0 0.0
    %941 = vmatprep.subr.mxu0 0.0
    %942 = vmatpush1.msra.mxu0 0.0
    %943 = vmatprep.subr.mxu0 0.0
    %944 = vmatpush1.msra.mxu0 0.0
    %945 = vmatprep.subr.mxu0 0.0
    %946 = vmatpush1.msra.mxu0 0.0
    %947 = vmatprep.subr.mxu0 0.0
    %948 = vmatpush1.msra.mxu0 0.0
    %949 = vmatprep.subr.mxu0 0.0
    %950 = vmatpush1.msra.mxu0 0.0
    %951 = vmatprep.subr.mxu0 0.0
    %952 = vmatpush1.msra.mxu0 0.0
    %953 = vmatprep.subr.mxu0 0.0
    %954 = vmatpush1.msra.mxu0 0.0
    %955 = vmatprep.subr.mxu0 0.0
    %956 = vmatpush1.msra.mxu0 0.0
    %957 = vmatprep.subr.mxu0 0.0
    %958 = vmatpush1.msra.mxu0 0.0
    %959 = vmatprep.subr.mxu0 0.0
    %960 = vmatpush1.msra.mxu0 0.0
    %961 = vmatprep.subr.mxu0 0.0
    %962 = vmatpush1.msra.mxu0 0.0
    %963 = vmatprep.mubr.f32.mxu0 0.0
    %964 = vmatmul.mubr.f32.gmra.mrb[0].mxu0 %v403
    %v965 = vpop.f32.mrb[0].mxu0
    %v966 = vadd.f32 %v896, %v965
    %v967 = vpop.f32.mrb[0].mxu0
    %968 = vdwg.mxu0
    %v969 = vmax.f32 %v685, 0.0
    %v970 = vmax.f32 %v687, 0.0
    %v971 = vmax.f32 %v966, 0.0
    %v972 = vld [vmem:[#allocation8] sm:$0xff]
    %v973 = vld [vmem:[#allocation8 + $0x8] sm:$0xff]
    %v974 = vld [vmem:[#allocation8 + $0x10] sm:$0xff]
    %v975 = vld [vmem:[#allocation8 + $0x18] sm:$0xff]
    %v976 = vld [vmem:[#allocation8 + $0x20] sm:$0xff]
    %v977 = vld [vmem:[#allocation8 + $0x28] sm:$0xff]
    %v978 = vld [vmem:[#allocation8 + $0x30] sm:$0xff]
    %v979 = vld [vmem:[#allocation8 + $0x38] sm:$0xff]
    %v980 = vld [vmem:[#allocation8 + $0x40] sm:$0xff]
    %v981 = vld [vmem:[#allocation8 + $0x48] sm:$0xff]
    %v982 = vld [vmem:[#allocation8 + $0x50] sm:$0xff]
    %v983 = vld [vmem:[#allocation8 + $0x58] sm:$0xff]
    %v984 = vld [vmem:[#allocation8 + $0x60] sm:$0xff]
    %v985 = vld [vmem:[#allocation8 + $0x68] sm:$0xff]
    %v986 = vld [vmem:[#allocation8 + $0x70] sm:$0xff]
    %v987 = vld [vmem:[#allocation8 + $0x78] sm:$0xff]
    %v988 = vld [vmem:[#allocation8 + $0x80] sm:$0xff]
    %v989 = vld [vmem:[#allocation8 + $0x88] sm:$0xff]
    %v990 = vld [vmem:[#allocation8 + $0x90] sm:$0xff]
    %v991 = vld [vmem:[#allocation8 + $0x98] sm:$0xff]
    %v992 = vld [vmem:[#allocation8 + $0xa0] sm:$0xff]
    %v993 = vld [vmem:[#allocation8 + $0xa8] sm:$0xff]
    %v994 = vld [vmem:[#allocation8 + $0xb0] sm:$0xff]
    %v995 = vld [vmem:[#allocation8 + $0xb8] sm:$0xff]
    %v996 = vld [vmem:[#allocation8 + $0xc0] sm:$0xff]
    %v997 = vld [vmem:[#allocation8 + $0xc8] sm:$0xff]
    %v998 = vld [vmem:[#allocation8 + $0xd0] sm:$0xff]
    %v999 = vld [vmem:[#allocation8 + $0xd8] sm:$0xff]
    %v1000 = vld [vmem:[#allocation8 + $0xe0] sm:$0xff]
    %v1001 = vld [vmem:[#allocation8 + $0xe8] sm:$0xff]
    %v1002 = vld [vmem:[#allocation8 + $0xf0] sm:$0xff]
    %v1003 = vld [vmem:[#allocation8 + $0xf8] sm:$0xff]
    %v1004 = vld [vmem:[#allocation8 + $0x100] sm:$0xff]
    %v1005 = vld [vmem:[#allocation8 + $0x108] sm:$0xff]
    %v1006 = vld [vmem:[#allocation8 + $0x110] sm:$0xff]
    %v1007 = vld [vmem:[#allocation8 + $0x118] sm:$0xff]
    %v1008 = vld [vmem:[#allocation8 + $0x120] sm:$0xff]
    %v1009 = vld [vmem:[#allocation8 + $0x128] sm:$0xff]
    %v1010 = vld [vmem:[#allocation8 + $0x130] sm:$0xff]
    %v1011 = vld [vmem:[#allocation8 + $0x138] sm:$0xff]
    %v1012 = vld [vmem:[#allocation8 + $0x140] sm:$0xff]
    %v1013 = vld [vmem:[#allocation8 + $0x148] sm:$0xff]
    %v1014 = vld [vmem:[#allocation8 + $0x150] sm:$0xff]
    %v1015 = vld [vmem:[#allocation8 + $0x158] sm:$0xff]
    %v1016 = vld [vmem:[#allocation8 + $0x160] sm:$0xff]
    %v1017 = vld [vmem:[#allocation8 + $0x168] sm:$0xff]
    %v1018 = vld [vmem:[#allocation8 + $0x170] sm:$0xff]
    %v1019 = vld [vmem:[#allocation8 + $0x178] sm:$0xff]
    %v1020 = vld [vmem:[#allocation10] sm:$0x1]
    %v1022 = vlaneseq
    %v1023 = vshrl.u32 %v1022, 7
    %v1024 = vsub.s32 0, %v1023
    %v1025 = vrot.slane %v1020, %v1024
    %1027 = vmatprep.subr.mxu0 0.0
    %1028 = vmatpush1.msra.mxu0 %v972
    %1029 = vmatprep.subr.mxu0 0.0
    %1030 = vmatpush1.msra.mxu0 %v973
    %1031 = vmatprep.subr.mxu0 0.0
    %1032 = vmatpush1.msra.mxu0 %v974
    %1033 = vmatprep.subr.mxu0 0.0
    %1034 = vmatpush1.msra.mxu0 %v975
    %1035 = vmatprep.subr.mxu0 0.0
    %1036 = vmatpush1.msra.mxu0 %v976
    %1037 = vmatprep.subr.mxu0 0.0
    %1038 = vmatpush1.msra.mxu0 %v977
    %1039 = vmatprep.subr.mxu0 0.0
    %1040 = vmatpush1.msra.mxu0 %v978
    %1041 = vmatprep.subr.mxu0 0.0
    %1042 = vmatpush1.msra.mxu0 %v979
    %1043 = vmatprep.subr.mxu0 0.0
    %1044 = vmatpush1.msra.mxu0 %v980
    %1045 = vmatprep.subr.mxu0 0.0
    %1046 = vmatpush1.msra.mxu0 %v981
    %1047 = vmatprep.subr.mxu0 0.0
    %1048 = vmatpush1.msra.mxu0 %v982
    %1049 = vmatprep.subr.mxu0 0.0
    %1050 = vmatpush1.msra.mxu0 %v983
    %1051 = vmatprep.subr.mxu0 0.0
    %1052 = vmatpush1.msra.mxu0 %v984
    %1053 = vmatprep.subr.mxu0 0.0
    %1054 = vmatpush1.msra.mxu0 %v985
    %1055 = vmatprep.subr.mxu0 0.0
    %1056 = vmatpush1.msra.mxu0 %v986
    %1057 = vmatprep.subr.mxu0 0.0
    %1058 = vmatpush1.msra.mxu0 %v987
    %1059 = vmatprep.subr.mxu0 0.0
    %1060 = vmatpush1.msra.mxu0 %v988
    %1061 = vmatprep.subr.mxu0 0.0
    %1062 = vmatpush1.msra.mxu0 %v989
    %1063 = vmatprep.subr.mxu0 0.0
    %1064 = vmatpush1.msra.mxu0 %v990
    %1065 = vmatprep.subr.mxu0 0.0
    %1066 = vmatpush1.msra.mxu0 %v991
    %1067 = vmatprep.subr.mxu0 0.0
    %1068 = vmatpush1.msra.mxu0 %v992
    %1069 = vmatprep.subr.mxu0 0.0
    %1070 = vmatpush1.msra.mxu0 %v993
    %1071 = vmatprep.subr.mxu0 0.0
    %1072 = vmatpush1.msra.mxu0 %v994
    %1073 = vmatprep.subr.mxu0 0.0
    %1074 = vmatpush1.msra.mxu0 %v995
    %1075 = vmatprep.subr.mxu0 0.0
    %1076 = vmatpush1.msra.mxu0 %v996
    %1077 = vmatprep.subr.mxu0 0.0
    %1078 = vmatpush1.msra.mxu0 %v997
    %1079 = vmatprep.subr.mxu0 0.0
    %1080 = vmatpush1.msra.mxu0 %v998
    %1081 = vmatprep.subr.mxu0 0.0
    %1082 = vmatpush1.msra.mxu0 %v999
    %1083 = vmatprep.subr.mxu0 0.0
    %1084 = vmatpush1.msra.mxu0 %v1000
    %1085 = vmatprep.subr.mxu0 0.0
    %1086 = vmatpush1.msra.mxu0 %v1001
    %1087 = vmatprep.subr.mxu0 0.0
    %1088 = vmatpush1.msra.mxu0 %v1002
    %1089 = vmatprep.subr.mxu0 0.0
    %1090 = vmatpush1.msra.mxu0 %v1003
    %1091 = vmatprep.mubr.f32.mxu0 %v970
    %1092 = vmatmul.mubr.f32.gmra.mrb[0].mxu0 %v969
    %v1093 = vpop.f32.mrb[0].mxu0
    %v1094 = vadd.f32 %v1025, %v1093
    %v1095 = vpop.f32.mrb[0].mxu0
    %1096 = vdwg.mxu0
    %1097 = vmatprep.subr.mxu0 0.0
    %1098 = vmatpush1.msra.mxu0 %v1004
    %1099 = vmatprep.subr.mxu0 0.0
    %1100 = vmatpush1.msra.mxu0 %v1005
    %1101 = vmatprep.subr.mxu0 0.0
    %1102 = vmatpush1.msra.mxu0 %v1006
    %1103 = vmatprep.subr.mxu0 0.0
    %1104 = vmatpush1.msra.mxu0 %v1007
    %1105 = vmatprep.subr.mxu0 0.0
    %1106 = vmatpush1.msra.mxu0 %v1008
    %1107 = vmatprep.subr.mxu0 0.0
    %1108 = vmatpush1.msra.mxu0 %v1009
    %1109 = vmatprep.subr.mxu0 0.0
    %1110 = vmatpush1.msra.mxu0 %v1010
    %1111 = vmatprep.subr.mxu0 0.0
    %1112 = vmatpush1.msra.mxu0 %v1011
    %1113 = vmatprep.subr.mxu0 0.0
    %1114 = vmatpush1.msra.mxu0 %v1012
    %1115 = vmatprep.subr.mxu0 0.0
    %1116 = vmatpush1.msra.mxu0 %v1013
    %1117 = vmatprep.subr.mxu0 0.0
    %1118 = vmatpush1.msra.mxu0 %v1014
    %1119 = vmatprep.subr.mxu0 0.0
    %1120 = vmatpush1.msra.mxu0 %v1015
    %1121 = vmatprep.subr.mxu0 0.0
    %1122 = vmatpush1.msra.mxu0 %v1016
    %1123 = vmatprep.subr.mxu0 0.0
    %1124 = vmatpush1.msra.mxu0 %v1017
    %1125 = vmatprep.subr.mxu0 0.0
    %1126 = vmatpush1.msra.mxu0 %v1018
    %1127 = vmatprep.subr.mxu0 0.0
    %1128 = vmatpush1.msra.mxu0 %v1019
    %1129 = vmatprep.subr.mxu0 0.0
    %1130 = vmatpush1.msra.mxu0 0.0
    %1131 = vmatprep.subr.mxu0 0.0
    %1132 = vmatpush1.msra.mxu0 0.0
    %1133 = vmatprep.subr.mxu0 0.0
    %1134 = vmatpush1.msra.mxu0 0.0
    %1135 = vmatprep.subr.mxu0 0.0
    %1136 = vmatpush1.msra.mxu0 0.0
    %1137 = vmatprep.subr.mxu0 0.0
    %1138 = vmatpush1.msra.mxu0 0.0
    %1139 = vmatprep.subr.mxu0 0.0
    %1140 = vmatpush1.msra.mxu0 0.0
    %1141 = vmatprep.subr.mxu0 0.0
    %1142 = vmatpush1.msra.mxu0 0.0
    %1143 = vmatprep.subr.mxu0 0.0
    %1144 = vmatpush1.msra.mxu0 0.0
    %1145 = vmatprep.subr.mxu0 0.0
    %1146 = vmatpush1.msra.mxu0 0.0
    %1147 = vmatprep.subr.mxu0 0.0
    %1148 = vmatpush1.msra.mxu0 0.0
    %1149 = vmatprep.subr.mxu0 0.0
    %1150 = vmatpush1.msra.mxu0 0.0
    %1151 = vmatprep.subr.mxu0 0.0
    %1152 = vmatpush1.msra.mxu0 0.0
    %1153 = vmatprep.subr.mxu0 0.0
    %1154 = vmatpush1.msra.mxu0 0.0
    %1155 = vmatprep.subr.mxu0 0.0
    %1156 = vmatpush1.msra.mxu0 0.0
    %1157 = vmatprep.subr.mxu0 0.0
    %1158 = vmatpush1.msra.mxu0 0.0
    %1159 = vmatprep.subr.mxu0 0.0
    %1160 = vmatpush1.msra.mxu0 0.0
    %1161 = vmatprep.mubr.f32.mxu0 0.0
    %1162 = vmatmul.mubr.f32.gmra.mrb[0].mxu0 %v971
    %v1163 = vpop.f32.mrb[0].mxu0
    %v1164 = vadd.f32 %v1094, %v1163
    %v1165 = vpop.f32.mrb[0].mxu0
    %1166 = vdwg.mxu0
    %1167 = vst [vmem:[#allocation11] sm:$0xff] %v1164
    // Predicated region
    $region42: #{tpu_custom_call.1} parent=1 // pred_check
      _
    $region43: #{tpu_custom_call.1} parent=1 // pred_check_branch
      %1169 = sbr.rel (0) target = $region45
    $region44: #{tpu_custom_call.1} parent=1 // pred_region
      %s1171 = ssub.s32 128, 128
      %1172 = vsyncadd [#allocation4], %s1171
      %s1174 = sshll.u32 [#allocation11], 4
      %s1175 = int_to_ptr.vmem [resolvable:$true] %s1174
      %1177 = dma.vmem_to_hbm [thread:$0]  %s1175, 128, %s5, [#allocation4]
    $region45: #{tpu_custom_call.1} parent=1 // pred_fallthru
      _
    // Predicated region
    $region46: #{tpu_custom_call.1} parent=1 // pred_check
      _
    $region47: #{tpu_custom_call.1} parent=1 // pred_check_branch
      %1179 = sbr.rel (0) target = $region49
    $region48: #{tpu_custom_call.1} parent=1 // pred_region
      %1180 = dma.done [#allocation4], 128
    $region49: #{tpu_custom_call.1} parent=1 // pred_fallthru
      _
    %1181 = vsyncpa [#allocation3], 1
    %1182 = vsyncpa [#allocation6], 1
    %1183 = vsyncpa [#allocation9], 1
    %1184 = vsyncpa [#allocation4], 1

</llo_original>
